<compile_context>
chip_gen: v7x
topology: tpu7x:2x2x1
jax: 0.10.0
libtpu: 0.0.40
codegen_flags: <defaults>
</compile_context>

<pallas_src>
import jax
import jax.numpy as jnp
from jax import lax
from jax.experimental import pallas as pl
from jax.experimental.pallas import tpu as pltpu


def _round_up(x, m):
    return (x + m - 1) // m * m


def _vmem_budget_bytes():
    """Per-generation VMEM budget (v7x: 64 MiB physical, v5e/v6e: 128 MiB)."""
    cap = 64 * 1024 * 1024                      # conservative fallback
    try:
        cap = int(pltpu.get_tpu_info().vmem_capacity_bytes)
    except Exception:
        pass
    # leave headroom for Mosaic-internal scratch
    return min((cap * 3) // 4, 96 * 1024 * 1024)


# ----------------------------------------------------------------------------
# Kernel 1: per-mode complex contraction  out[b,o,p] = sum_i a[b,i,p]*w[i,o,p]
#   direct 4-multiply form, f32 accumulation, bf16 weight storage,
#   output channels chunked to bound accumulator vreg pressure.
# ----------------------------------------------------------------------------
def _make_spectral_kernel(I, O, TP, OC):
    if I <= 8:
        unroll = True
    elif I % 8 == 0:
        unroll = 8
    elif I % 4 == 0:
        unroll = 4
    else:
        unroll = 1

    def kernel(ar_ref, ai_ref, wr_ref, wi_ref, or_ref, oi_ref):
        # ar/ai: (I, TP) f32   wr/wi: (I, O, TP) bf16   or/oi: (O, TP) f32
        for o0 in range(0, O, OC):
            oc = min(OC, O - o0)

            def body(i, carry, o0=o0, oc=oc):
                acc_re, acc_im = carry
                a_r = ar_ref[pl.ds(i, 1), :]                         # (1, TP)
                a_i = ai_ref[pl.ds(i, 1), :]
                w_r = wr_ref[i, o0:o0 + oc, :].astype(jnp.float32)   # (oc, TP)
                w_i = wi_ref[i, o0:o0 + oc, :].astype(jnp.float32)
                acc_re = acc_re + (a_r * w_r - a_i * w_i)
                acc_im = acc_im + (a_r * w_i + a_i * w_r)
                return acc_re, acc_im

            acc_re, acc_im = lax.fori_loop(
                0, I, body,
                (jnp.zeros((oc, TP), jnp.float32),
                 jnp.zeros((oc, TP), jnp.float32)),
                unroll=unroll)
            or_ref[o0:o0 + oc, :] = acc_re
            oi_ref[o0:o0 + oc, :] = acc_im

    return kernel


def spectral_matmul(ar, ai, wr, wi, budget):
    B, I, P = ar.shape
    O = wr.shape[1]
    P_pad = _round_up(P, 128)

    def fits(tp):
        need = 2 * (2 * I * O * tp * 2      # wr, wi (bf16), double-buffered
                    + 2 * I * tp * 4        # ar, ai (f32)
                    + 2 * O * tp * 4)       # out re/im (f32)
        return need <= (budget * 4) // 5

    TP = 128
    for cand in (2048, 1024, 512, 256, 128):
        if cand <= P_pad and P_pad % cand == 0 and fits(cand):
            TP = cand
            break

    if P_pad != P:
        pad = ((0, 0), (0, 0), (0, P_pad - P))
        ar = jnp.pad(ar, pad)
        ai = jnp.pad(ai, pad)
        wr = jnp.pad(wr, pad)
        wi = jnp.pad(wi, pad)
    # bf16 weight storage halves weight DMA/VMEM; arithmetic stays f32 so it is
    # also correct/fast on v5e (no bf16 VPU datapath there).
    wr = wr.astype(jnp.bfloat16)
    wi = wi.astype(jnp.bfloat16)

    OC = max(1, min(O, 8, 8192 // TP))
    grid = (P_pad // TP, B)      # P outer -> weight tile stays resident across B

    a_spec = pl.BlockSpec((None, I, TP), lambda p, b: (b, 0, p))
    w_spec = pl.BlockSpec((I, O, TP), lambda p, b: (0, 0, p))
    o_spec = pl.BlockSpec((None, O, TP), lambda p, b: (b, 0, p))

    out_re, out_im = pl.pallas_call(
        _make_spectral_kernel(I, O, TP, OC),
        out_shape=(jax.ShapeDtypeStruct((B, O, P_pad), jnp.float32),
                   jax.ShapeDtypeStruct((B, O, P_pad), jnp.float32)),
        grid=grid,
        in_specs=[a_spec, a_spec, w_spec, w_spec],
        out_specs=(o_spec, o_spec),
        compiler_params=pltpu.CompilerParams(
            dimension_semantics=("parallel", "parallel"),
            vmem_limit_bytes=budget),
    )(ar, ai, wr, wi)
    return out_re[:, :, :P], out_im[:, :, :P]


# ----------------------------------------------------------------------------
# Kernel 2: fused 3x3 conv + residual + ReLU with in-kernel im2col.
# The padded activation is flattened to one axis f = row*(N+2) + col; for an
# output tile [t*TS, t*TS+TS) the 9 taps are constant lane offsets
# delta = dy*(N+2) + dx into the per-batch VMEM-resident slab.
# ----------------------------------------------------------------------------
def conv_res_relu(x_nchw, conv_w, x_spec, budget):
    B, I, M, N = x_nchw.shape
    O = conv_w.shape[0]
    Wp = N + 2                                  # padded row width
    Sout = M * Wp                               # flat output axis (2 junk cols/row)
    Sout128 = _round_up(Sout, 128)
    WEXT = _round_up(2 * Wp + 2, 128)           # max tap offset, lane-rounded

    def fits(ts):
        sx_pad = _round_up(Sout, ts) + WEXT
        need = 2 * (I * sx_pad * 2              # activation slab (bf16)
                    + 2 * O * ts * 4            # spec + out tiles (f32)
                    + 9 * O * I * 2)            # tap weights (bf16)
        return need <= (budget * 4) // 5

    TS = 128
    for cand in (Sout128, 8192, 4096, 2048, 1024, 512, 256, 128):
        if cand <= Sout128 and Sout128 % cand == 0 and fits(cand):
            TS = cand
            break
    Sout_pad = _round_up(Sout, TS)
    Sx_pad = Sout_pad + WEXT
    T = Sout_pad // TS

    # Zero-pad spatially once and flatten: xflat[b,i,r*Wp+c] = xpad[b,i,r,c].
    # TODO(synk): for very large M*N switch to overlapping row-slab tiles so the
    # per-batch activation slab stays under the VMEM budget.
    xpad = jnp.pad(x_nchw, ((0, 0), (0, 0), (1, 1), (1, 1)))
    xflat = xpad.reshape(B, I, (M + 2) * Wp)
    xflat = jnp.pad(xflat, ((0, 0), (0, 0), (0, Sx_pad - (M + 2) * Wp)))
    xflat = xflat.astype(jnp.bfloat16)

    # (O, I, 3, 3) -> (9, O, I) with tap index k = dy*3 + dx.
    w_taps = jnp.transpose(conv_w, (2, 3, 0, 1)).reshape(9, O, I)
    w_taps = w_taps.astype(jnp.bfloat16)

    # Residual laid out on the same flat coordinate grid.
    spec = jnp.pad(x_spec, ((0, 0), (0, 0), (0, 0), (0, 2))).reshape(B, O, Sout)
    spec = jnp.pad(spec, ((0, 0), (0, 0), (0, Sout_pad - Sout)))

    def kernel(w_ref, x_ref, spec_ref, out_ref):
        # w: (9, O, I) bf16   x: (I, Sx_pad) bf16 (whole image, resident per b)
        # spec/out: (O, TS) f32
        base = pl.multiple_of(pl.program_id(1) * TS, 128)
        acc = spec_ref[...]
        for dy in range(3):
            for dx in range(3):
                tap = x_ref[:, pl.ds(base + dy * Wp + dx, TS)]       # (I, TS)
                acc = acc + jnp.dot(w_ref[dy * 3 + dx], tap,
                                    preferred_element_type=jnp.float32)
        out_ref[...] = jnp.maximum(acc, 0.0)

    out = pl.pallas_call(
        kernel,
        out_shape=jax.ShapeDtypeStruct((B, O, Sout_pad), jnp.float32),
        grid=(B, T),             # activation slab stays resident across the T axis
        in_specs=[
            pl.BlockSpec((9, O, I), lambda b, t: (0, 0, 0)),
            pl.BlockSpec((None, I, Sx_pad), lambda b, t: (b, 0, 0)),
            pl.BlockSpec((None, O, TS), lambda b, t: (b, 0, t)),
        ],
        out_specs=pl.BlockSpec((None, O, TS), lambda b, t: (b, 0, t)),
        compiler_params=pltpu.CompilerParams(
            dimension_semantics=("parallel", "parallel"),
            vmem_limit_bytes=budget),
    )(w_taps, xflat, spec)

    out = out[:, :, :Sout].reshape(B, O, M, Wp)[:, :, :, :N]
    return out


# ----------------------------------------------------------------------------
# Full forward (mirrors SpectralConv2d.forward, residual=True).
# ----------------------------------------------------------------------------
def spectral_conv2d_forward(x, conv_w, fw0, fw1, n_modes):
    B, M, N, I = x.shape
    # The PyTorch module's out_ft/irfft2 axis bookkeeping is only consistent
    # for square spatial dims; keep identical semantics.
    assert M == N, "SpectralConv2d assumes square spatial dims (M == N)"
    O = conv_w.shape[0]
    budget = _vmem_budget_bytes()
    x_nchw = jnp.transpose(x, (0, 3, 1, 2)).astype(jnp.float32)     # (B, I, M, N)

    # ---- spectral path (FFT glue in plain JAX) ----
    # TODO(synk): rfft2/irfft2 have no Pallas equivalent; done with jnp.fft.
    x_ft = jnp.fft.rfft2(x_nchw, s=(M, N), axes=(-2, -1), norm="ortho")
    a0 = x_ft[:, :, :n_modes, :n_modes]
    a1 = x_ft[:, :, M - n_modes:, :n_modes]
    Pc = n_modes * n_modes
    ar = jnp.concatenate([a0.real.reshape(B, I, Pc),
                          a1.real.reshape(B, I, Pc)], axis=-1).astype(jnp.float32)
    ai = jnp.concatenate([a0.imag.reshape(B, I, Pc),
                          a1.imag.reshape(B, I, Pc)], axis=-1).astype(jnp.float32)
    wr = jnp.concatenate([fw0[..., 0].reshape(I, O, Pc),
                          fw1[..., 0].reshape(I, O, Pc)], axis=-1).astype(jnp.float32)
    wi = jnp.concatenate([fw0[..., 1].reshape(I, O, Pc),
                          fw1[..., 1].reshape(I, O, Pc)], axis=-1).astype(jnp.float32)

    out_re, out_im = spectral_matmul(ar, ai, wr, wi, budget)         # (B, O, 2*Pc)

    o0 = (out_re[:, :, :Pc] + 1j * out_im[:, :, :Pc]).reshape(B, O, n_modes, n_modes)
    o1 = (out_re[:, :, Pc:] + 1j * out_im[:, :, Pc:]).reshape(B, O, n_modes, n_modes)

    out_ft = jnp.zeros((B, O, N, M // 2 + 1), jnp.complex64)
    out_ft = out_ft.at[:, :, :n_modes, :n_modes].set(o0)
    out_ft = out_ft.at[:, :, N - n_modes:, :n_modes].set(o1)
    x_spec = jnp.fft.irfft2(out_ft, s=(N, M), axes=(-2, -1), norm="ortho")

    # ---- spatial conv + residual + ReLU, fused Pallas kernel ----
    y_nchw = conv_res_relu(x_nchw, conv_w, x_spec.astype(jnp.float32), budget)
    return jnp.transpose(y_nchw, (0, 2, 3, 1))                       # (B, M, N, O)


# ----------------------------------------------------------------------------
# Pure-JAX reference (for verification only)
# ----------------------------------------------------------------------------
def reference_forward(x, conv_w, fw0, fw1, n_modes):
    B, M, N, I = x.shape
    O = conv_w.shape[0]
    xn = jnp.transpose(x, (0, 3, 1, 2)).astype(jnp.float32)
    res = lax.conv_general_dilated(
        xn, conv_w, (1, 1), "SAME",
        dimension_numbers=("NCHW", "OIHW", "NCHW"))
    x_ft = jnp.fft.rfft2(xn, s=(M, N), axes=(-2, -1), norm="ortho")

    def cm(a, w):
        wr_, wi_ = w[..., 0], w[..., 1]
        re = (jnp.einsum("bixy,ioxy->boxy", a.real, wr_)
              - jnp.einsum("bixy,ioxy->boxy", a.imag, wi_))
        im = (jnp.einsum("bixy,ioxy->boxy", a.imag, wr_)
              + jnp.einsum("bixy,ioxy->boxy", a.real, wi_))
        return re + 1j * im

    out_ft = jnp.zeros((B, O, N, M // 2 + 1), jnp.complex64)
    out_ft = out_ft.at[:, :, :n_modes, :n_modes].set(
        cm(x_ft[:, :, :n_modes, :n_modes], fw0))
    out_ft = out_ft.at[:, :, N - n_modes:, :n_modes].set(
        cm(x_ft[:, :, M - n_modes:, :n_modes], fw1))
    xs = jnp.fft.irfft2(out_ft, s=(N, M), axes=(-2, -1), norm="ortho")
    y = jnp.maximum(xs + res, 0.0)
    return jnp.transpose(y, (0, 2, 3, 1))


if __name__ == "__main__":
    B, M, N = 2, 16, 16
    in_dim, out_dim, n_modes = 4, 4, 8

    key = jax.random.PRNGKey(0)
    k_x, k_conv, k_f0, k_f1 = jax.random.split(key, 4)

    x = jax.random.normal(k_x, (B, M, N, in_dim), dtype=jnp.float32)

    # conv3x3 weight (out_dim, in_dim, 3, 3), PyTorch-style default init (uniform)
    fan_in_conv = in_dim * 9
    bound = 1.0 / (fan_in_conv ** 0.5)
    conv_w = jax.random.uniform(k_conv, (out_dim, in_dim, 3, 3),
                                minval=-bound, maxval=bound, dtype=jnp.float32)

    # fourier weights (in_dim, out_dim, n_modes, n_modes, 2), xavier_normal_ with
    # gain = 1/(in_dim*out_dim)
    gain = 1.0 / (in_dim * out_dim)
    fan_in_f = out_dim * n_modes * n_modes * 2
    fan_out_f = in_dim * n_modes * n_modes * 2
    std = gain * (2.0 / (fan_in_f + fan_out_f)) ** 0.5
    fw_shape = (in_dim, out_dim, n_modes, n_modes, 2)
    fw0 = std * jax.random.normal(k_f0, fw_shape, dtype=jnp.float32)
    fw1 = std * jax.random.normal(k_f1, fw_shape, dtype=jnp.float32)

    out = spectral_conv2d_forward(x, conv_w, fw0, fw1, n_modes)
    out = jax.block_until_ready(out)

    ref = jax.block_until_ready(reference_forward(x, conv_w, fw0, fw1, n_modes))
    assert out.shape == (B, M, N, out_dim)
    # bf16 MXU operands / bf16 weight storage dominate the tolerance.
    assert jnp.allclose(out, ref, atol=2e-2, rtol=2e-2), \
        float(jnp.max(jnp.abs(out - ref)))

    print("KERNEL_OK")
</pallas_src>

<mosaic_0001>
module attributes {stable_mosaic.version = 11 : i64} {
  func.func @kernel(%arg0: i32, %arg1: i32, %arg2: memref<1x4x128xf32, #tpu.memory_space<vmem>>, %arg3: memref<1x4x128xf32, #tpu.memory_space<vmem>>, %arg4: memref<4x4x128xbf16, #tpu.memory_space<vmem>>, %arg5: memref<4x4x128xbf16, #tpu.memory_space<vmem>>, %arg6: memref<1x4x128xf32, #tpu.memory_space<vmem>>, %arg7: memref<1x4x128xf32, #tpu.memory_space<vmem>>) attributes {dimension_semantics = [#tpu.dimension_semantics<parallel>, #tpu.dimension_semantics<parallel>], iteration_bounds = array<i64: 1, 2>, scalar_prefetch = 0 : i64, scratch_operands = 0 : i64, tpu.core_type = #tpu.core_type<tc>, window_params = [{transform_indices = @transform_0, window_bounds = array<i64: 1, 4, 128>}, {transform_indices = @transform_1, window_bounds = array<i64: 1, 4, 128>}, {transform_indices = @transform_2, window_bounds = array<i64: 4, 4, 128>}, {transform_indices = @transform_3, window_bounds = array<i64: 4, 4, 128>}, {transform_indices = @transform_4, window_bounds = array<i64: 1, 4, 128>}, {transform_indices = @transform_5, window_bounds = array<i64: 1, 4, 128>}]} {
    %cst = arith.constant 0.000000e+00 : f32
    %0 = vector.broadcast %cst : f32 to vector<4x128xf32>
    %cst_0 = arith.constant 0.000000e+00 : f32
    %1 = vector.broadcast %cst_0 : f32 to vector<4x128xf32>
    %c0_i32 = arith.constant 0 : i32
    %c0 = arith.constant 0 : index
    %2 = arith.index_cast %c0_i32 : i32 to index
    %c0_1 = arith.constant 0 : index
    %3 = vector.load %arg2[%c0, %2, %c0_1] : memref<1x4x128xf32, #tpu.memory_space<vmem>>, vector<1x1x128xf32>
    %4 = vector.shape_cast %3 : vector<1x1x128xf32> to vector<1x128xf32>
    %c0_2 = arith.constant 0 : index
    %5 = arith.index_cast %c0_i32 : i32 to index
    %c0_3 = arith.constant 0 : index
    %6 = vector.load %arg3[%c0_2, %5, %c0_3] : memref<1x4x128xf32, #tpu.memory_space<vmem>>, vector<1x1x128xf32>
    %7 = vector.shape_cast %6 : vector<1x1x128xf32> to vector<1x128xf32>
    %8 = arith.index_cast %c0_i32 : i32 to index
    %c0_4 = arith.constant 0 : index
    %c0_5 = arith.constant 0 : index
    %9 = vector.load %arg4[%8, %c0_4, %c0_5] : memref<4x4x128xbf16, #tpu.memory_space<vmem>>, vector<1x4x128xbf16>
    %10 = vector.shape_cast %9 : vector<1x4x128xbf16> to vector<4x128xbf16>
    %11 = arith.extf %10 : vector<4x128xbf16> to vector<4x128xf32>
    %12 = arith.index_cast %c0_i32 : i32 to index
    %c0_6 = arith.constant 0 : index
    %c0_7 = arith.constant 0 : index
    %13 = vector.load %arg5[%12, %c0_6, %c0_7] : memref<4x4x128xbf16, #tpu.memory_space<vmem>>, vector<1x4x128xbf16>
    %14 = vector.shape_cast %13 : vector<1x4x128xbf16> to vector<4x128xbf16>
    %15 = arith.extf %14 : vector<4x128xbf16> to vector<4x128xf32>
    %16 = vector.broadcast %4 : vector<1x128xf32> to vector<4x128xf32>
    %17 = arith.mulf %16, %11 : vector<4x128xf32>
    %18 = vector.broadcast %7 : vector<1x128xf32> to vector<4x128xf32>
    %19 = arith.mulf %18, %15 : vector<4x128xf32>
    %20 = arith.subf %17, %19 : vector<4x128xf32>
    %21 = arith.addf %0, %20 : vector<4x128xf32>
    %22 = vector.broadcast %4 : vector<1x128xf32> to vector<4x128xf32>
    %23 = arith.mulf %22, %15 : vector<4x128xf32>
    %24 = vector.broadcast %7 : vector<1x128xf32> to vector<4x128xf32>
    %25 = arith.mulf %24, %11 : vector<4x128xf32>
    %26 = arith.addf %23, %25 : vector<4x128xf32>
    %27 = arith.addf %1, %26 : vector<4x128xf32>
    %c1_i32 = arith.constant 1 : i32
    %c0_8 = arith.constant 0 : index
    %28 = arith.index_cast %c1_i32 : i32 to index
    %c0_9 = arith.constant 0 : index
    %29 = vector.load %arg2[%c0_8, %28, %c0_9] : memref<1x4x128xf32, #tpu.memory_space<vmem>>, vector<1x1x128xf32>
    %30 = vector.shape_cast %29 : vector<1x1x128xf32> to vector<1x128xf32>
    %c0_10 = arith.constant 0 : index
    %31 = arith.index_cast %c1_i32 : i32 to index
    %c0_11 = arith.constant 0 : index
    %32 = vector.load %arg3[%c0_10, %31, %c0_11] : memref<1x4x128xf32, #tpu.memory_space<vmem>>, vector<1x1x128xf32>
    %33 = vector.shape_cast %32 : vector<1x1x128xf32> to vector<1x128xf32>
    %34 = arith.index_cast %c1_i32 : i32 to index
    %c0_12 = arith.constant 0 : index
    %c0_13 = arith.constant 0 : index
    %35 = vector.load %arg4[%34, %c0_12, %c0_13] : memref<4x4x128xbf16, #tpu.memory_space<vmem>>, vector<1x4x128xbf16>
    %36 = vector.shape_cast %35 : vector<1x4x128xbf16> to vector<4x128xbf16>
    %37 = arith.extf %36 : vector<4x128xbf16> to vector<4x128xf32>
    %38 = arith.index_cast %c1_i32 : i32 to index
    %c0_14 = arith.constant 0 : index
    %c0_15 = arith.constant 0 : index
    %39 = vector.load %arg5[%38, %c0_14, %c0_15] : memref<4x4x128xbf16, #tpu.memory_space<vmem>>, vector<1x4x128xbf16>
    %40 = vector.shape_cast %39 : vector<1x4x128xbf16> to vector<4x128xbf16>
    %41 = arith.extf %40 : vector<4x128xbf16> to vector<4x128xf32>
    %42 = vector.broadcast %30 : vector<1x128xf32> to vector<4x128xf32>
    %43 = arith.mulf %42, %37 : vector<4x128xf32>
    %44 = vector.broadcast %33 : vector<1x128xf32> to vector<4x128xf32>
    %45 = arith.mulf %44, %41 : vector<4x128xf32>
    %46 = arith.subf %43, %45 : vector<4x128xf32>
    %47 = arith.addf %21, %46 : vector<4x128xf32>
    %48 = vector.broadcast %30 : vector<1x128xf32> to vector<4x128xf32>
    %49 = arith.mulf %48, %41 : vector<4x128xf32>
    %50 = vector.broadcast %33 : vector<1x128xf32> to vector<4x128xf32>
    %51 = arith.mulf %50, %37 : vector<4x128xf32>
    %52 = arith.addf %49, %51 : vector<4x128xf32>
    %53 = arith.addf %27, %52 : vector<4x128xf32>
    %c2_i32 = arith.constant 2 : i32
    %c0_16 = arith.constant 0 : index
    %54 = arith.index_cast %c2_i32 : i32 to index
    %c0_17 = arith.constant 0 : index
    %55 = vector.load %arg2[%c0_16, %54, %c0_17] : memref<1x4x128xf32, #tpu.memory_space<vmem>>, vector<1x1x128xf32>
    %56 = vector.shape_cast %55 : vector<1x1x128xf32> to vector<1x128xf32>
    %c0_18 = arith.constant 0 : index
    %57 = arith.index_cast %c2_i32 : i32 to index
    %c0_19 = arith.constant 0 : index
    %58 = vector.load %arg3[%c0_18, %57, %c0_19] : memref<1x4x128xf32, #tpu.memory_space<vmem>>, vector<1x1x128xf32>
    %59 = vector.shape_cast %58 : vector<1x1x128xf32> to vector<1x128xf32>
    %60 = arith.index_cast %c2_i32 : i32 to index
    %c0_20 = arith.constant 0 : index
    %c0_21 = arith.constant 0 : index
    %61 = vector.load %arg4[%60, %c0_20, %c0_21] : memref<4x4x128xbf16, #tpu.memory_space<vmem>>, vector<1x4x128xbf16>
    %62 = vector.shape_cast %61 : vector<1x4x128xbf16> to vector<4x128xbf16>
    %63 = arith.extf %62 : vector<4x128xbf16> to vector<4x128xf32>
    %64 = arith.index_cast %c2_i32 : i32 to index
    %c0_22 = arith.constant 0 : index
    %c0_23 = arith.constant 0 : index
    %65 = vector.load %arg5[%64, %c0_22, %c0_23] : memref<4x4x128xbf16, #tpu.memory_space<vmem>>, vector<1x4x128xbf16>
    %66 = vector.shape_cast %65 : vector<1x4x128xbf16> to vector<4x128xbf16>
    %67 = arith.extf %66 : vector<4x128xbf16> to vector<4x128xf32>
    %68 = vector.broadcast %56 : vector<1x128xf32> to vector<4x128xf32>
    %69 = arith.mulf %68, %63 : vector<4x128xf32>
    %70 = vector.broadcast %59 : vector<1x128xf32> to vector<4x128xf32>
    %71 = arith.mulf %70, %67 : vector<4x128xf32>
    %72 = arith.subf %69, %71 : vector<4x128xf32>
    %73 = arith.addf %47, %72 : vector<4x128xf32>
    %74 = vector.broadcast %56 : vector<1x128xf32> to vector<4x128xf32>
    %75 = arith.mulf %74, %67 : vector<4x128xf32>
    %76 = vector.broadcast %59 : vector<1x128xf32> to vector<4x128xf32>
    %77 = arith.mulf %76, %63 : vector<4x128xf32>
    %78 = arith.addf %75, %77 : vector<4x128xf32>
    %79 = arith.addf %53, %78 : vector<4x128xf32>
    %c3_i32 = arith.constant 3 : i32
    %c0_24 = arith.constant 0 : index
    %80 = arith.index_cast %c3_i32 : i32 to index
    %c0_25 = arith.constant 0 : index
    %81 = vector.load %arg2[%c0_24, %80, %c0_25] : memref<1x4x128xf32, #tpu.memory_space<vmem>>, vector<1x1x128xf32>
    %82 = vector.shape_cast %81 : vector<1x1x128xf32> to vector<1x128xf32>
    %c0_26 = arith.constant 0 : index
    %83 = arith.index_cast %c3_i32 : i32 to index
    %c0_27 = arith.constant 0 : index
    %84 = vector.load %arg3[%c0_26, %83, %c0_27] : memref<1x4x128xf32, #tpu.memory_space<vmem>>, vector<1x1x128xf32>
    %85 = vector.shape_cast %84 : vector<1x1x128xf32> to vector<1x128xf32>
    %86 = arith.index_cast %c3_i32 : i32 to index
    %c0_28 = arith.constant 0 : index
    %c0_29 = arith.constant 0 : index
    %87 = vector.load %arg4[%86, %c0_28, %c0_29] : memref<4x4x128xbf16, #tpu.memory_space<vmem>>, vector<1x4x128xbf16>
    %88 = vector.shape_cast %87 : vector<1x4x128xbf16> to vector<4x128xbf16>
    %89 = arith.extf %88 : vector<4x128xbf16> to vector<4x128xf32>
    %90 = arith.index_cast %c3_i32 : i32 to index
    %c0_30 = arith.constant 0 : index
    %c0_31 = arith.constant 0 : index
    %91 = vector.load %arg5[%90, %c0_30, %c0_31] : memref<4x4x128xbf16, #tpu.memory_space<vmem>>, vector<1x4x128xbf16>
    %92 = vector.shape_cast %91 : vector<1x4x128xbf16> to vector<4x128xbf16>
    %93 = arith.extf %92 : vector<4x128xbf16> to vector<4x128xf32>
    %94 = vector.broadcast %82 : vector<1x128xf32> to vector<4x128xf32>
    %95 = arith.mulf %94, %89 : vector<4x128xf32>
    %96 = vector.broadcast %85 : vector<1x128xf32> to vector<4x128xf32>
    %97 = arith.mulf %96, %93 : vector<4x128xf32>
    %98 = arith.subf %95, %97 : vector<4x128xf32>
    %99 = arith.addf %73, %98 : vector<4x128xf32>
    %100 = vector.broadcast %82 : vector<1x128xf32> to vector<4x128xf32>
    %101 = arith.mulf %100, %93 : vector<4x128xf32>
    %102 = vector.broadcast %85 : vector<1x128xf32> to vector<4x128xf32>
    %103 = arith.mulf %102, %89 : vector<4x128xf32>
    %104 = arith.addf %101, %103 : vector<4x128xf32>
    %105 = arith.addf %79, %104 : vector<4x128xf32>
    %c4_i32 = arith.constant 4 : i32
    %c0_32 = arith.constant 0 : index
    %c0_33 = arith.constant 0 : index
    %c0_34 = arith.constant 0 : index
    %106 = vector.load %arg6[%c0_32, %c0_33, %c0_34] : memref<1x4x128xf32, #tpu.memory_space<vmem>>, vector<1x4x128xf32>
    %107 = vector.shape_cast %106 : vector<1x4x128xf32> to vector<4x128xf32>
    %108 = vector.shape_cast %99 : vector<4x128xf32> to vector<1x4x128xf32>
    tpu.vector_store %arg6[%c0_32, %c0_33, %c0_34], %108 {strides = array<i32>} : memref<1x4x128xf32, #tpu.memory_space<vmem>>, vector<1x4x128xf32>,
    %c0_35 = arith.constant 0 : index
    %c0_36 = arith.constant 0 : index
    %c0_37 = arith.constant 0 : index
    %109 = vector.load %arg7[%c0_35, %c0_36, %c0_37] : memref<1x4x128xf32, #tpu.memory_space<vmem>>, vector<1x4x128xf32>
    %110 = vector.shape_cast %109 : vector<1x4x128xf32> to vector<4x128xf32>
    %111 = vector.shape_cast %105 : vector<4x128xf32> to vector<1x4x128xf32>
    tpu.vector_store %arg7[%c0_35, %c0_36, %c0_37], %111 {strides = array<i32>} : memref<1x4x128xf32, #tpu.memory_space<vmem>>, vector<1x4x128xf32>,
    return
  }
  func.func @transform_0(%arg0: i32, %arg1: i32) -> (i32, i32, i32) {
    %c0_i32 = arith.constant 0 : i32
    %c0_i32_0 = arith.constant 0 : i32
    return %arg1, %c0_i32, %arg0 : i32, i32, i32
  }
  func.func @transform_1(%arg0: i32, %arg1: i32) -> (i32, i32, i32) {
    %c0_i32 = arith.constant 0 : i32
    %c0_i32_0 = arith.constant 0 : i32
    return %arg1, %c0_i32, %arg0 : i32, i32, i32
  }
  func.func @transform_2(%arg0: i32, %arg1: i32) -> (i32, i32, i32) {
    %c0_i32 = arith.constant 0 : i32
    %c0_i32_0 = arith.constant 0 : i32
    %c0_i32_1 = arith.constant 0 : i32
    return %c0_i32, %c0_i32_0, %arg0 : i32, i32, i32
  }
  func.func @transform_3(%arg0: i32, %arg1: i32) -> (i32, i32, i32) {
    %c0_i32 = arith.constant 0 : i32
    %c0_i32_0 = arith.constant 0 : i32
    %c0_i32_1 = arith.constant 0 : i32
    return %c0_i32, %c0_i32_0, %arg0 : i32, i32, i32
  }
  func.func @transform_4(%arg0: i32, %arg1: i32) -> (i32, i32, i32) {
    %c0_i32 = arith.constant 0 : i32
    %c0_i32_0 = arith.constant 0 : i32
    return %arg1, %c0_i32, %arg0 : i32, i32, i32
  }
  func.func @transform_5(%arg0: i32, %arg1: i32) -> (i32, i32, i32) {
    %c0_i32 = arith.constant 0 : i32
    %c0_i32_0 = arith.constant 0 : i32
    return %arg1, %c0_i32, %arg0 : i32, i32, i32
  }
}

</mosaic_0001>

<llo_original>
// kernel: tpu_custom_call.1
$region0: #{tpu_custom_call.1}
  #allocation0 [shape = 'u32[]', space=smem, size = 0x4, offset = 0x4, fixed_abs, tag = 'smem constant byte address 0x4 - core index']
  #allocation1 [shape = 'u32[144,128]{1,0:T(1,128)}', space=vmem, size = 0x12000, scoped, tag = 'internal scratch']
  %s0 = inlined_call_operand.hbm [shape: f32[2,4,128], index: 0, kind: input, shape index: {}]
  %s1 = inlined_call_operand.hbm [shape: f32[2,4,128], index: 1, kind: input, shape index: {}]
  %s2 = inlined_call_operand.hbm [shape: bf16[4,4,128], index: 2, kind: input, shape index: {}]
  %s3 = inlined_call_operand.vmem [shape: bf16[4,4,128], index: 3, kind: input, shape index: {}]
  %s4 = inlined_call_operand.hbm [shape: f32[2,4,128], index: 4, kind: output, shape index: {0}]
  %s5 = inlined_call_operand.hbm [shape: f32[2,4,128], index: 5, kind: output, shape index: {1}]
  %6 = xla_tuple %s4, %s5
  %s7 = sld [smem:[#allocation0]]
  $region69: #{tpu_custom_call.1} parent=0
    _
  %s9 = ssub.s32 1, %s7
  %s10 = scalar_select 0, %s9, %s7
  $region1: #{tpu_custom_call.1} parent=0
    #allocation2 [shape = 'u8[4096]{0}', space=vmem, size = 0x1000, scoped, tag = 'input window, operand 0']
    #allocation3 [shape = 's32[2]{0}', space=sflag, size = 0x8, scoped, tag = 'scoped memory for tpu_custom_call.1']
    #allocation4 [shape = 's32[2]{0}', space=sflag, size = 0x8, scoped, tag = 'scoped memory for tpu_custom_call.1']
    #allocation5 [shape = 'u8[4096]{0}', space=vmem, size = 0x1000, scoped, tag = 'input window, operand 1']
    #allocation6 [shape = 's32[2]{0}', space=sflag, size = 0x8, scoped, tag = 'scoped memory for tpu_custom_call.1']
    #allocation7 [shape = 'u8[4096]{0}', space=vmem, size = 0x1000, scoped, tag = 'input window, operand 2, single buffered']
    #allocation8 [shape = 'u8[4096]{0}', space=vmem, size = 0x1000, scoped, tag = 'output window, operand 0']
    #allocation9 [shape = 'u8[4096]{0}', space=vmem, size = 0x1000, scoped, tag = 'output window, operand 1']
    #allocation10 [shape = 's32[2]{0}', space=sflag, size = 0x8, scoped, tag = 'scoped memory for tpu_custom_call.1']
    %11 = vsyncpa [#allocation3], 0
    %s12 = scalar_lea.sflag [#allocation3], 1
    %13 = vsyncpa %s12, 0
    %14 = vsyncpa [#allocation6], 0
    %s15 = scalar_lea.sflag [#allocation6], 1
    %16 = vsyncpa %s15, 0
    %17 = vsyncpa [#allocation4], 0
    %s18 = scalar_lea.sflag [#allocation4], 1
    %19 = vsyncpa %s18, 0
    %20 = vsyncpa [#allocation10], 0
    %s21 = scalar_lea.sflag [#allocation10], 1
    %22 = vsyncpa %s21, 0
    loop: start=0, step=1, limit=4
    $region2: #{tpu_custom_call.1} parent=1 // loop_pre_header
      _
    $region3: #{tpu_custom_call.1} parent=1 // loop_header
      %s24 = sphi 0, %s28
      %p25 = scmp.ge.s32.totalorder %s24, 4
      %s31 = sphi 0, %s43
      %s32 = sphi 0, %s39
      %s33 = sphi 0, %s31
      %s34 = sphi 0, %s32
      %s35 = sphi 0, %s33
      %s36 = sphi 0, %s34
      %s48 = sphi 0, %s50
      %s51 = sphi 0, %s48
      %s52 = sphi 0, %s51
      %s68 = sphi 0, %s52
      %s76 = sphi 0, %s78
      %s79 = sphi 0, %s76
      %s80 = sphi 0, %s79
      %s96 = sphi 0, %s80
      %s102 = sphi 0, %s104
      %s105 = sphi 0, %s102
      %s106 = sphi 0, %s105
      %s122 = sphi 0, %s106
      %s128 = sphi 0, %s130
      %s131 = sphi 0, %s128
      %s132 = sphi 0, %s131
      %s148 = sphi 0, %s132
      %s156 = sphi 0, %s158
      %s159 = sphi 0, %s156
      %s160 = sphi 0, %s159
      %s176 = sphi 0, %s160
      %s184 = sphi 0, %s186
      %s187 = sphi 0, %s184
      %s188 = sphi 0, %s187
      %s204 = sphi 0, %s188
    $region4: #{tpu_custom_call.1} parent=1 // loop_header_branch
      %27 = sbr.rel (%p25) target = $region8
    $region5: #{tpu_custom_call.1} parent=1 // loop_body
      %s29 = ssub.s32 %s24, 1
      %s30 = ssub.s32 %s24, 2
      %s37 = sadd.s32 1, %s32
      %p38 = scmp.ge.s32.totalorder %s37, 2
      %s39 = scalar_select %p38, 0, %s37
      %s40 = sadd.s32 1, %s31
      %s41 = scalar_select %p38, %s40, %s31
      %p42 = scmp.ge.s32.totalorder %s41, 1
      %s43 = scalar_select %p42, 0, %s41
      %s44 = ssub.s32 %s32, %s39
      %s45 = ssub.s32 %s31, %s43
      %s46 = sor.u32 %s44, %s45
      %p47 = scmp.eq.s32.totalorder %s46, 0
      %s49 = sadd.s32 %s48, 1
      %s50 = scalar_select %p47, %s48, %s49
      %p53 = pneg %p47
      %p54 = scmp.eq.s32.totalorder %s24, 1
      %p55 = por %p53, %p54
      %p56 = scmp.ne.s32.totalorder %s48, %s51
      %p57 = scmp.eq.s32.totalorder %s24, 0
      %p58 = por %p56, %p57
      %p59 = scmp.ne.s32.totalorder %s48, %s51
      %p60 = scmp.eq.s32.totalorder %s29, 1
      %p61 = por %p59, %p60
      %p62 = scmp.ne.s32.totalorder %s51, %s52
      %p63 = scmp.eq.s32.totalorder %s29, 0
      %p64 = por %p62, %p63
      %p65 = scmp.ne.s32.totalorder %s51, %s52
      %p66 = scmp.eq.s32.totalorder %s30, 1
      %p67 = por %p65, %p66
      %p69 = scmp.ne.s32.totalorder %s52, %s68
      %p70 = scmp.eq.s32.totalorder %s30, 0
      %p71 = por %p69, %p70
      %s72 = ssub.s32 %s32, %s39
      %s73 = ssub.s32 %s31, %s43
      %s74 = sor.u32 %s72, %s73
      %p75 = scmp.eq.s32.totalorder %s74, 0
      %s77 = sadd.s32 %s76, 1
      %s78 = scalar_select %p75, %s76, %s77
      %p81 = pneg %p75
      %p82 = scmp.eq.s32.totalorder %s24, 1
      %p83 = por %p81, %p82
      %p84 = scmp.ne.s32.totalorder %s76, %s79
      %p85 = scmp.eq.s32.totalorder %s24, 0
      %p86 = por %p84, %p85
      %p87 = scmp.ne.s32.totalorder %s76, %s79
      %p88 = scmp.eq.s32.totalorder %s29, 1
      %p89 = por %p87, %p88
      %p90 = scmp.ne.s32.totalorder %s79, %s80
      %p91 = scmp.eq.s32.totalorder %s29, 0
      %p92 = por %p90, %p91
      %p93 = scmp.ne.s32.totalorder %s79, %s80
      %p94 = scmp.eq.s32.totalorder %s30, 1
      %p95 = por %p93, %p94
      %p97 = scmp.ne.s32.totalorder %s80, %s96
      %p98 = scmp.eq.s32.totalorder %s30, 0
      %p99 = por %p97, %p98
      %s100 = ssub.s32 %s31, %s43
      %p101 = scmp.eq.s32.totalorder %s100, 0
      %s103 = sadd.s32 %s102, 1
      %s104 = scalar_select %p101, %s102, %s103
      %p107 = pneg %p101
      %p108 = scmp.eq.s32.totalorder %s24, 1
      %p109 = por %p107, %p108
      %p110 = scmp.ne.s32.totalorder %s102, %s105
      %p111 = scmp.eq.s32.totalorder %s24, 0
      %p112 = por %p110, %p111
      %p113 = scmp.ne.s32.totalorder %s102, %s105
      %p114 = scmp.eq.s32.totalorder %s29, 1
      %p115 = por %p113, %p114
      %p116 = scmp.ne.s32.totalorder %s105, %s106
      %p117 = scmp.eq.s32.totalorder %s29, 0
      %p118 = por %p116, %p117
      %p119 = scmp.ne.s32.totalorder %s105, %s106
      %p120 = scmp.eq.s32.totalorder %s30, 1
      %p121 = por %p119, %p120
      %p123 = scmp.ne.s32.totalorder %s106, %s122
      %p124 = scmp.eq.s32.totalorder %s30, 0
      %p125 = por %p123, %p124
      %s126 = ssub.s32 %s31, %s43
      %p127 = scmp.eq.s32.totalorder %s126, 0
      %s129 = sadd.s32 %s128, 1
      %s130 = scalar_select %p127, %s128, %s129
      %p133 = pneg %p127
      %p134 = scmp.eq.s32.totalorder %s24, 1
      %p135 = por %p133, %p134
      %p136 = scmp.ne.s32.totalorder %s128, %s131
      %p137 = scmp.eq.s32.totalorder %s24, 0
      %p138 = por %p136, %p137
      %p139 = scmp.ne.s32.totalorder %s128, %s131
      %p140 = scmp.eq.s32.totalorder %s29, 1
      %p141 = por %p139, %p140
      %p142 = scmp.ne.s32.totalorder %s131, %s132
      %p143 = scmp.eq.s32.totalorder %s29, 0
      %p144 = por %p142, %p143
      %p145 = scmp.ne.s32.totalorder %s131, %s132
      %p146 = scmp.eq.s32.totalorder %s30, 1
      %p147 = por %p145, %p146
      %p149 = scmp.ne.s32.totalorder %s132, %s148
      %p150 = scmp.eq.s32.totalorder %s30, 0
      %p151 = por %p149, %p150
      %s152 = ssub.s32 %s32, %s39
      %s153 = ssub.s32 %s31, %s43
      %s154 = sor.u32 %s152, %s153
      %p155 = scmp.eq.s32.totalorder %s154, 0
      %s157 = sadd.s32 %s156, 1
      %s158 = scalar_select %p155, %s156, %s157
      %p161 = pneg %p155
      %p162 = scmp.eq.s32.totalorder %s24, 1
      %p163 = por %p161, %p162
      %p164 = scmp.ne.s32.totalorder %s156, %s159
      %p165 = scmp.eq.s32.totalorder %s24, 0
      %p166 = por %p164, %p165
      %p167 = scmp.ne.s32.totalorder %s156, %s159
      %p168 = scmp.eq.s32.totalorder %s29, 1
      %p169 = por %p167, %p168
      %p170 = scmp.ne.s32.totalorder %s159, %s160
      %p171 = scmp.eq.s32.totalorder %s29, 0
      %p172 = por %p170, %p171
      %p173 = scmp.ne.s32.totalorder %s159, %s160
      %p174 = scmp.eq.s32.totalorder %s30, 1
      %p175 = por %p173, %p174
      %p177 = scmp.ne.s32.totalorder %s160, %s176
      %p178 = scmp.eq.s32.totalorder %s30, 0
      %p179 = por %p177, %p178
      %s180 = ssub.s32 %s32, %s39
      %s181 = ssub.s32 %s31, %s43
      %s182 = sor.u32 %s180, %s181
      %p183 = scmp.eq.s32.totalorder %s182, 0
      %s185 = sadd.s32 %s184, 1
      %s186 = scalar_select %p183, %s184, %s185
      %p189 = pneg %p183
      %p190 = scmp.eq.s32.totalorder %s24, 1
      %p191 = por %p189, %p190
      %p192 = scmp.ne.s32.totalorder %s184, %s187
      %p193 = scmp.eq.s32.totalorder %s24, 0
      %p194 = por %p192, %p193
      %p195 = scmp.ne.s32.totalorder %s184, %s187
      %p196 = scmp.eq.s32.totalorder %s29, 1
      %p197 = por %p195, %p196
      %p198 = scmp.ne.s32.totalorder %s187, %s188
      %p199 = scmp.eq.s32.totalorder %s29, 0
      %p200 = por %p198, %p199
      %p201 = scmp.ne.s32.totalorder %s187, %s188
      %p202 = scmp.eq.s32.totalorder %s30, 1
      %p203 = por %p201, %p202
      %p205 = scmp.ne.s32.totalorder %s188, %s204
      %p206 = scmp.eq.s32.totalorder %s30, 0
      %p207 = por %p205, %p206
      %p208 = scmp.le.s32.totalorder 1, %s24
      %p209 = scmp.lt.s32.totalorder %s24, 3
      %p210 = pnand %p208, %p209
      %p211 = pneg %p210
      // Predicated region
      $region9: #{tpu_custom_call.1} parent=5 // pred_check
        _
      $region10: #{tpu_custom_call.1} parent=5 // pred_check_branch
        %213 = sbr.rel (%p210) target = $region12
      $region11: #{tpu_custom_call.1} parent=5 // pred_region
        %s214 = ssub.s32 %s24, 1
        // Predicated region
        $region13: #{tpu_custom_call.1} parent=11 // pred_check
          %p215 = pneg %p118
        $region14: #{tpu_custom_call.1} parent=11 // pred_check_branch
          %217 = sbr.rel (%p215) target = $region16
        $region15: #{tpu_custom_call.1} parent=11 // pred_region
          %s219 = ssub.s32 128, 128
          %220 = vsyncadd [#allocation6], %s219
          %s221 = smul.addr %s33, 32
          %s222 = scalar_lea.hbm %s2, %s221
          %s223 = sshll.u32 [#allocation7], 4
          %s224 = int_to_ptr.vmem [resolvable:$true] %s223
          %229 = dma.hbm_to_vmem [thread:$0]  %s222, 128, %s224, [#allocation6], 32, 32, 2
        $region16: #{tpu_custom_call.1} parent=11 // pred_fallthru
          _
        // Predicated region
        $region17: #{tpu_custom_call.1} parent=11 // pred_check
          %p230 = pneg %p144
        $region18: #{tpu_custom_call.1} parent=11 // pred_check_branch
          %232 = sbr.rel (%p230) target = $region20
        $region19: #{tpu_custom_call.1} parent=11 // pred_region
          %p233 = scmp.lt.s32.totalorder %s33, 0
          %s234 = scalar_select %p233, %s33, 0
          %s235 = smul.addr %s234, 2
          %s236 = scalar_lea.vmem %s3, %s235
        $region20: #{tpu_custom_call.1} parent=11 // pred_fallthru
          _
      $region12: #{tpu_custom_call.1} parent=5 // pred_fallthru
        _
      %p237 = scmp.lt.s32.totalorder %s24, 2
      // Predicated region
      $region21: #{tpu_custom_call.1} parent=5 // pred_check
        %p238 = pneg %p237
      $region22: #{tpu_custom_call.1} parent=5 // pred_check_branch
        %240 = sbr.rel (%p238) target = $region24
      $region23: #{tpu_custom_call.1} parent=5 // pred_region
        // Predicated region
        $region25: #{tpu_custom_call.1} parent=23 // pred_check
          %p241 = pneg %p58
        $region26: #{tpu_custom_call.1} parent=23 // pred_check_branch
          %243 = sbr.rel (%p241) target = $region28
        $region27: #{tpu_custom_call.1} parent=23 // pred_region
          %s244 = sand.u32 %s48, 1
          %s245 = scalar_lea.sflag [#allocation3], %s244
          %s246 = sand.u32 %s48, 1
          %s247 = smul.addr %s246, 4
          %s248 = scalar_lea.vmem [#allocation2], %s247
          %s250 = ssub.s32 64, 64
          %251 = vsyncadd %s245, %s250
          %s252 = sadd.s32 %s31, %s32
          %s253 = smul.addr %s252, 64
          %s254 = scalar_lea.hbm %s0, %s253
          %s256 = sshll.u32 %s248, 4
          %s257 = int_to_ptr.vmem [resolvable:$true] %s256
          %259 = dma.hbm_to_vmem [thread:$0]  %s254, 64, %s257, %s245
        $region28: #{tpu_custom_call.1} parent=23 // pred_fallthru
          _
        // Predicated region
        $region29: #{tpu_custom_call.1} parent=23 // pred_check
          %p260 = pneg %p86
        $region30: #{tpu_custom_call.1} parent=23 // pred_check_branch
          %262 = sbr.rel (%p260) target = $region32
        $region31: #{tpu_custom_call.1} parent=23 // pred_region
          %s263 = sand.u32 %s24, 1
          %s264 = scalar_lea.sflag [#allocation6], %s263
          %s265 = sand.u32 %s76, 1
          %s266 = smul.addr %s265, 4
          %s267 = scalar_lea.vmem [#allocation5], %s266
          %s269 = ssub.s32 64, 64
          %270 = vsyncadd %s264, %s269
          %s271 = sadd.s32 %s31, %s32
          %s272 = smul.addr %s271, 64
          %s273 = scalar_lea.hbm %s1, %s272
          %s275 = sshll.u32 %s267, 4
          %s276 = int_to_ptr.vmem [resolvable:$true] %s275
          %278 = dma.hbm_to_vmem [thread:$0]  %s273, 64, %s276, %s264
        $region32: #{tpu_custom_call.1} parent=23 // pred_fallthru
          _
      $region24: #{tpu_custom_call.1} parent=5 // pred_fallthru
        _
      %p279 = scmp.le.s32.totalorder 1, %s24
      %p280 = scmp.lt.s32.totalorder %s24, 3
      %p281 = pnand %p279, %p280
      %p282 = pneg %p281
      // Predicated region
      $region33: #{tpu_custom_call.1} parent=5 // pred_check
        _
      $region34: #{tpu_custom_call.1} parent=5 // pred_check_branch
        %284 = sbr.rel (%p281) target = $region36
      $region35: #{tpu_custom_call.1} parent=5 // pred_region
        %s285 = ssub.s32 %s24, 1
        %s286 = sand.u32 %s51, 1
        %s287 = scalar_lea.sflag [#allocation3], %s286
        %s288 = sand.u32 %s51, 1
        %s289 = smul.addr %s288, 4
        %s290 = scalar_lea.vmem [#allocation2], %s289
        // Predicated region
        $region37: #{tpu_custom_call.1} parent=35 // pred_check
          %p291 = pneg %p64
        $region38: #{tpu_custom_call.1} parent=35 // pred_check_branch
          %293 = sbr.rel (%p291) target = $region40
        $region39: #{tpu_custom_call.1} parent=35 // pred_region
          %294 = dma.done %s287, 64
        $region40: #{tpu_custom_call.1} parent=35 // pred_fallthru
          _
        %s295 = sand.u32 %s29, 1
        %s296 = scalar_lea.sflag [#allocation6], %s295
        %s297 = sand.u32 %s79, 1
        %s298 = smul.addr %s297, 4
        %s299 = scalar_lea.vmem [#allocation5], %s298
        // Predicated region
        $region41: #{tpu_custom_call.1} parent=35 // pred_check
          %p300 = pneg %p92
        $region42: #{tpu_custom_call.1} parent=35 // pred_check_branch
          %302 = sbr.rel (%p300) target = $region44
        $region43: #{tpu_custom_call.1} parent=35 // pred_region
          %303 = dma.done %s296, 64
        $region44: #{tpu_custom_call.1} parent=35 // pred_fallthru
          _
        // Predicated region
        $region45: #{tpu_custom_call.1} parent=35 // pred_check
          %p304 = pneg %p118
        $region46: #{tpu_custom_call.1} parent=35 // pred_check_branch
          %306 = sbr.rel (%p304) target = $region48
        $region47: #{tpu_custom_call.1} parent=35 // pred_region
          %307 = dma.done [#allocation6], 128
        $region48: #{tpu_custom_call.1} parent=35 // pred_fallthru
          _
        %s308 = sand.u32 %s51, 1
        %s309 = scalar_lea.sflag [#allocation3], %s308
        %s310 = sand.u32 %s51, 1
        %s311 = smul.addr %s310, 4
        %s312 = scalar_lea.vmem [#allocation2], %s311
        %p313 = pneg %p64
        %p314 = pneg %p61
        %s315 = sand.u32 %s29, 1
        %s316 = scalar_lea.sflag [#allocation6], %s315
        %s317 = sand.u32 %s79, 1
        %s318 = smul.addr %s317, 4
        %s319 = scalar_lea.vmem [#allocation5], %s318
        %p320 = pneg %p92
        %p321 = pneg %p89
        %p322 = pneg %p118
        %p323 = pneg %p115
        %p324 = scmp.lt.s32.totalorder %s33, 0
        %s325 = scalar_select %p324, %s33, 0
        %s326 = smul.addr %s325, 2
        %s327 = scalar_lea.vmem %s3, %s326
        %p328 = pneg %p144
        %p329 = pneg %p141
        %p330 = pneg %p172
        %p331 = pneg %p169
        %s332 = sand.u32 %s159, 1
        %s333 = scalar_lea.sflag [#allocation4], %s332
        %s334 = sand.u32 %s159, 1
        %s335 = smul.addr %s334, 4
        %s336 = scalar_lea.vmem [#allocation8], %s335
        %p337 = pneg %p200
        %p338 = pneg %p197
        %s339 = sand.u32 %s187, 1
        %s340 = scalar_lea.sflag [#allocation10], %s339
        %s341 = sand.u32 %s187, 1
        %s342 = smul.addr %s341, 4
        %s343 = scalar_lea.vmem [#allocation9], %s342
        %p344 = scmp.lt.s32.totalorder %s33, 0
        %s345 = scalar_select %p344, %s33, 0
        %s346 = smul.addr %s345, 2
        %s347 = scalar_lea.vmem %s3, %s346
        %v348 = vld [vmem:[%s290] sm:$0x1]
        %v349 = vld [vmem:[%s299] sm:$0x1]
        %v350 = vld [vmem:[#allocation7] sm:$0x3]
        %v351 = vunpack.c.l.bf16 %v350
        %v352 = vld [vmem:[%s347] sm:$0x3]
        %v353 = vunpack.c.l.bf16 %v352
        %v354 = vlaneseq
        %v355 = vshrl.u32 %v354, 7
        %v356 = vsub.s32 0, %v355
        %v357 = vrot.slane %v348, %v356
        %v358 = vmul.f32 %v357, %v351
        %v359 = vlaneseq
        %v360 = vshrl.u32 %v359, 7
        %v361 = vsub.s32 0, %v360
        %v362 = vrot.slane %v349, %v361
        %v363 = vmul.f32 %v362, %v353
        %v364 = vsub.f32 %v358, %v363
        %v365 = vadd.f32 %v364, 0.0
        %v366 = vmul.f32 %v357, %v353
        %v367 = vmul.f32 %v362, %v351
        %v368 = vadd.f32 %v366, %v367
        %v369 = vadd.f32 %v368, 0.0
        %v370 = vld [vmem:[%s290 + $0x1] sm:$0x1]
        %v371 = vld [vmem:[%s299 + $0x1] sm:$0x1]
        %s372 = scalar_lea.vmem [#allocation7], 2
        %v373 = vld [vmem:[%s372] sm:$0x3]
        %v374 = vunpack.c.l.bf16 %v373
        %s375 = scalar_lea.vmem %s347, 2
        %v376 = vld [vmem:[%s375] sm:$0x3]
        %v377 = vunpack.c.l.bf16 %v376
        %v378 = vlaneseq
        %v379 = vshrl.u32 %v378, 7
        %v380 = vsub.s32 0, %v379
        %v381 = vrot.slane %v370, %v380
        %v382 = vmul.f32 %v381, %v374
        %v383 = vlaneseq
        %v384 = vshrl.u32 %v383, 7
        %v385 = vsub.s32 0, %v384
        %v386 = vrot.slane %v371, %v385
        %v387 = vmul.f32 %v386, %v377
        %v388 = vsub.f32 %v382, %v387
        %v389 = vadd.f32 %v365, %v388
        %v390 = vmul.f32 %v381, %v377
        %v391 = vmul.f32 %v386, %v374
        %v392 = vadd.f32 %v390, %v391
        %v393 = vadd.f32 %v369, %v392
        %v394 = vld [vmem:[%s290 + $0x2] sm:$0x1]
        %v395 = vld [vmem:[%s299 + $0x2] sm:$0x1]
        %s396 = scalar_lea.vmem [#allocation7], 4
        %v397 = vld [vmem:[%s396] sm:$0x3]
        %v398 = vunpack.c.l.bf16 %v397
        %s399 = scalar_lea.vmem %s347, 4
        %v400 = vld [vmem:[%s399] sm:$0x3]
        %v401 = vunpack.c.l.bf16 %v400
        %v402 = vlaneseq
        %v403 = vshrl.u32 %v402, 7
        %v404 = vsub.s32 0, %v403
        %v405 = vrot.slane %v394, %v404
        %v406 = vmul.f32 %v405, %v398
        %v407 = vlaneseq
        %v408 = vshrl.u32 %v407, 7
        %v409 = vsub.s32 0, %v408
        %v410 = vrot.slane %v395, %v409
        %v411 = vmul.f32 %v410, %v401
        %v412 = vsub.f32 %v406, %v411
        %v413 = vadd.f32 %v389, %v412
        %v414 = vmul.f32 %v405, %v401
        %v415 = vmul.f32 %v410, %v398
        %v416 = vadd.f32 %v414, %v415
        %v417 = vadd.f32 %v393, %v416
        %v418 = vld [vmem:[%s290 + $0x3] sm:$0x1]
        %v419 = vld [vmem:[%s299 + $0x3] sm:$0x1]
        %s420 = scalar_lea.vmem [#allocation7], 6
        %v421 = vld [vmem:[%s420] sm:$0x3]
        %v422 = vunpack.c.l.bf16 %v421
        %s423 = scalar_lea.vmem %s347, 6
        %v424 = vld [vmem:[%s423] sm:$0x3]
        %v425 = vunpack.c.l.bf16 %v424
        %v426 = vlaneseq
        %v427 = vshrl.u32 %v426, 7
        %v428 = vsub.s32 0, %v427
        %v429 = vrot.slane %v418, %v428
        %v430 = vmul.f32 %v429, %v422
        %v431 = vlaneseq
        %v432 = vshrl.u32 %v431, 7
        %v433 = vsub.s32 0, %v432
        %v434 = vrot.slane %v419, %v433
        %v435 = vmul.f32 %v434, %v425
        %v436 = vsub.f32 %v430, %v435
        %v437 = vadd.f32 %v413, %v436
        %v438 = vmul.f32 %v429, %v425
        %v439 = vmul.f32 %v434, %v422
        %v440 = vadd.f32 %v438, %v439
        %v441 = vadd.f32 %v417, %v440
        %442 = vst [vmem:[%s336] sm:$0xf] %v437
        %443 = vst [vmem:[%s343] sm:$0xf] %v441
        %s444 = sand.u32 %s159, 1
        %s445 = scalar_lea.sflag [#allocation4], %s444
        %s446 = sand.u32 %s159, 1
        %s447 = smul.addr %s446, 4
        %s448 = scalar_lea.vmem [#allocation8], %s447
        %s449 = sand.u32 %s187, 1
        %s450 = scalar_lea.sflag [#allocation10], %s449
        %s451 = sand.u32 %s187, 1
        %s452 = smul.addr %s451, 4
        %s453 = scalar_lea.vmem [#allocation9], %s452
        // Predicated region
        $region49: #{tpu_custom_call.1} parent=35 // pred_check
          %p454 = pneg %p169
        $region50: #{tpu_custom_call.1} parent=35 // pred_check_branch
          %456 = sbr.rel (%p454) target = $region52
        $region51: #{tpu_custom_call.1} parent=35 // pred_region
          %s458 = ssub.s32 64, 64
          %459 = vsyncadd %s445, %s458
          %s460 = sadd.s32 %s33, %s34
          %s461 = smul.addr %s460, 64
          %s462 = scalar_lea.hbm %s4, %s461
          %s464 = sshll.u32 %s448, 4
          %s465 = int_to_ptr.vmem [resolvable:$true] %s464
          %467 = dma.vmem_to_hbm [thread:$0]  %s465, 64, %s462, %s445
        $region52: #{tpu_custom_call.1} parent=35 // pred_fallthru
          _
        // Predicated region
        $region53: #{tpu_custom_call.1} parent=35 // pred_check
          %p468 = pneg %p197
        $region54: #{tpu_custom_call.1} parent=35 // pred_check_branch
          %470 = sbr.rel (%p468) target = $region56
        $region55: #{tpu_custom_call.1} parent=35 // pred_region
          %s472 = ssub.s32 64, 64
          %473 = vsyncadd %s450, %s472
          %s474 = sadd.s32 %s33, %s34
          %s475 = smul.addr %s474, 64
          %s476 = scalar_lea.hbm %s5, %s475
          %s478 = sshll.u32 %s453, 4
          %s479 = int_to_ptr.vmem [resolvable:$true] %s478
          %481 = dma.vmem_to_hbm [thread:$0]  %s479, 64, %s476, %s450
        $region56: #{tpu_custom_call.1} parent=35 // pred_fallthru
          _
      $region36: #{tpu_custom_call.1} parent=5 // pred_fallthru
        _
      %p482 = scmp.le.s32.totalorder 2, %s24
      // Predicated region
      $region57: #{tpu_custom_call.1} parent=5 // pred_check
        %p483 = pneg %p482
      $region58: #{tpu_custom_call.1} parent=5 // pred_check_branch
        %485 = sbr.rel (%p483) target = $region60
      $region59: #{tpu_custom_call.1} parent=5 // pred_region
        %s486 = ssub.s32 %s24, 2
        // Predicated region
        $region61: #{tpu_custom_call.1} parent=59 // pred_check
          %p487 = pneg %p175
        $region62: #{tpu_custom_call.1} parent=59 // pred_check_branch
          %489 = sbr.rel (%p487) target = $region64
        $region63: #{tpu_custom_call.1} parent=59 // pred_region
          %s490 = sand.u32 %s160, 1
          %s491 = scalar_lea.sflag [#allocation4], %s490
          %s492 = sand.u32 %s160, 1
          %s493 = smul.addr %s492, 4
          %s494 = scalar_lea.vmem [#allocation8], %s493
          %495 = dma.done %s491, 64
        $region64: #{tpu_custom_call.1} parent=59 // pred_fallthru
          _
        // Predicated region
        $region65: #{tpu_custom_call.1} parent=59 // pred_check
          %p496 = pneg %p203
        $region66: #{tpu_custom_call.1} parent=59 // pred_check_branch
          %498 = sbr.rel (%p496) target = $region68
        $region67: #{tpu_custom_call.1} parent=59 // pred_region
          %s499 = sand.u32 %s188, 1
          %s500 = scalar_lea.sflag [#allocation10], %s499
          %s501 = sand.u32 %s188, 1
          %s502 = smul.addr %s501, 4
          %s503 = scalar_lea.vmem [#allocation9], %s502
          %504 = dma.done %s500, 64
        $region68: #{tpu_custom_call.1} parent=59 // pred_fallthru
          _
      $region60: #{tpu_custom_call.1} parent=5 // pred_fallthru
        _
    $region6: #{tpu_custom_call.1} parent=1 // loop_footer
      %s28 = sadd.s32 1, %s24
    $region7: #{tpu_custom_call.1} parent=1 // loop_footer_branch
      %23 = sbr.rel target = $region3
    $region8: #{tpu_custom_call.1} parent=1 // loop_exit
      _
    %505 = vsyncpa [#allocation3], 1
    %s506 = scalar_lea.sflag [#allocation3], 1
    %507 = vsyncpa %s506, 1
    %508 = vsyncpa [#allocation6], 1
    %s509 = scalar_lea.sflag [#allocation6], 1
    %510 = vsyncpa %s509, 1
    %511 = vsyncpa [#allocation4], 1
    %s512 = scalar_lea.sflag [#allocation4], 1
    %513 = vsyncpa %s512, 1
    %514 = vsyncpa [#allocation10], 1
    %s515 = scalar_lea.sflag [#allocation10], 1
    %516 = vsyncpa %s515, 1

</llo_original>
